<compile_context>
chip_gen: v6e
topology: v6e:2x2x1
jax: 0.10.0
libtpu: 0.0.40
codegen_flags: <defaults>
</compile_context>

<pallas_src>
import jax
import jax.numpy as jnp
from jax.experimental import pallas as pl
from jax.experimental.pallas import tpu as pltpu


_ACOS_COEFFS = (  # Abramowitz & Stegun 4.4.46, |err| <= 2e-8 rad on [0, 1].
    1.5707963050, -0.2145988016, 0.0889789874, -0.0501743046,
    0.0308918810, -0.0170881256, 0.0066700901, -0.0012624911,
)


def _acos(x):
    """f32 arccos via minimax polynomial (uses only mul/add/sqrt/select)."""
    a = jnp.abs(x)
    p = jnp.float32(_ACOS_COEFFS[-1])
    for c in _ACOS_COEFFS[-2::-1]:
        p = p * a + jnp.float32(c)
    r = jnp.sqrt(jnp.maximum(1.0 - a, 0.0)) * p
    return jnp.where(x >= 0, r, jnp.float32(jnp.pi) - r)


def _sad_kernel(x_ref, t_ref, seg_ref, o_ref):
    # x_ref, t_ref: (tile, k*B) blocks holding k spectra per 128-lane row.
    # seg_ref:      (k*B, k) static block-of-ones segment matrix.
    # o_ref:        (tile, k) angles.
    x = x_ref[...].astype(jnp.float32)
    t = t_ref[...].astype(jnp.float32)
    seg = seg_ref[...]
    # Segmented per-spectrum reductions as tiny matmuls on the idle MXU.
    xx = jnp.dot(x * x, seg, preferred_element_type=jnp.float32)
    tt = jnp.dot(t * t, seg, preferred_element_type=jnp.float32)
    xt = jnp.dot(x * t, seg, preferred_element_type=jnp.float32)
    cos = xt * jax.lax.rsqrt(xx * tt)     # one EUP rsqrt instead of 2x sqrt + div
    cos = jnp.clip(cos, -1.0, 1.0)        # intentional: ref would NaN on |cos| > 1
    o_ref[...] = _acos(cos)


def _vmem_capacity_bytes():
    try:
        return int(pltpu.get_tpu_info().vmem_capacity_bytes)
    except Exception:
        return 64 * 1024 * 1024           # assume the smallest generation (v7x)


def sad(inp, target, num_bands, *, tile_rows=None):
    """Pallas implementation of SAD.forward(inp, target) -> (N, 1, 1) angles."""
    x = inp.reshape(-1, num_bands)        # native dtype; upcast happens in-kernel
    t = target.reshape(-1, num_bands)
    n = x.shape[0]
    itemsize = jnp.dtype(x.dtype).itemsize

    # ---- lane-dense packing: k spectra per 128-lane row ---------------------
    k = max(1, 128 // num_bands)
    width = k * num_bands
    n_pad = pl.cdiv(n, k) * k
    if n_pad != n:
        # One extra copy, only when N is not a multiple of the pack factor.
        x = jnp.pad(x, ((0, n_pad - n), (0, 0)), constant_values=1)
        t = jnp.pad(t, ((0, n_pad - n), (0, 0)), constant_values=1)
    n_pack = n_pad // k
    x = x.reshape(n_pack, width)          # pure row-major reshape, no relayout
    t = t.reshape(n_pack, width)

    # Static segment matrix: seg[i, j] = 1 iff lane i belongs to spectrum j.
    seg = (jnp.arange(width, dtype=jnp.int32)[:, None] // num_bands
           == jnp.arange(k, dtype=jnp.int32)[None, :]).astype(jnp.float32)

    # ---- generation-aware tile policy ---------------------------------------
    sub = max(8, 32 // max(itemsize, 1))            # f32: 8, bf16: 16, int8: 32
    padded_width = max(128, pl.cdiv(width, 128) * 128)
    row_bytes = padded_width * itemsize

    vmem_cap = _vmem_capacity_bytes()               # 64 MiB v7x, 128 MiB v5e/v6e
    vmem_ceiling = min((vmem_cap * 3) // 4, 96 * 1024 * 1024)
    input_budget = vmem_ceiling // 2                # room for out/seg/internal scratch

    tile_cap = max(sub, input_budget // (4 * row_bytes))    # 2 inputs x 2 buffers
    if tile_rows is not None:
        tile_cap = min(tile_cap, int(tile_rows))    # enforce VMEM cap on user tiles
    tile_cap = max(sub, (tile_cap // sub) * sub)
    tile_cap = min(tile_cap, 4096)                  # multi-MiB blocks: past roofline knee

    if n_pack <= tile_cap:
        tile = n_pack                               # single block == full array dims
    else:
        # Keep tile count even & balanced so v7x's 2 TCs share the work evenly.
        pairs = pl.cdiv(n_pack, 2 * tile_cap)
        tile = pl.cdiv(pl.cdiv(n_pack, 2 * pairs), sub) * sub
    num_tiles = pl.cdiv(n_pack, tile)

    block_bytes = tile * row_bytes
    n_buf = 3 if (num_tiles > 2 and block_bytes < 512 * 1024) else 2
    in_kwargs = {"pipeline_mode": pl.Buffered(n_buf)} if n_buf != 2 else {}

    need = 2 * n_buf * block_bytes + 2 * tile * 128 * 4 + width * 128 * 4
    vmem_limit = int(min(vmem_ceiling, max(32 * 1024 * 1024, 2 * need)))

    out = pl.pallas_call(
        _sad_kernel,
        out_shape=jax.ShapeDtypeStruct((num_tiles * tile, k), jnp.float32),
        grid_spec=pltpu.PrefetchScalarGridSpec(
            num_scalar_prefetch=0,
            grid=(num_tiles,),
            in_specs=[
                pl.BlockSpec((tile, width), lambda i: (i, 0), **in_kwargs),
                pl.BlockSpec((tile, width), lambda i: (i, 0), **in_kwargs),
                pl.BlockSpec((width, k), lambda i: (0, 0)),
            ],
            out_specs=pl.BlockSpec((tile, k), lambda i: (i, 0)),
        ),
        compiler_params=pltpu.CompilerParams(
            dimension_semantics=("parallel",),
            vmem_limit_bytes=vmem_limit,
        ),
    )(x, t, seg)

    # (num_tiles*tile, k) flattens row-major into original spectrum order;
    # padded / garbage rows land at indices >= n and are dropped here.
    return out.reshape(-1)[:n].reshape(n, 1, 1)


def _sad_reference(inp, target, num_bands):
    x = inp.reshape(-1, num_bands).astype(jnp.float32)
    t = target.reshape(-1, num_bands).astype(jnp.float32)
    xn = jnp.sqrt(jnp.sum(x * x, axis=-1))
    tn = jnp.sqrt(jnp.sum(t * t, axis=-1))
    s = jnp.sum(x * t, axis=-1)
    return jnp.arccos(s / (xn * tn)).reshape(-1, 1, 1)


if __name__ == "__main__":
    key = jax.random.PRNGKey(0)
    k1, k2, k3, k4 = jax.random.split(key, 4)

    # Case 1: packed path (num_bands=32 -> 4 spectra per 128-lane row).
    num_bands = 32
    batch, pixels = 2, 16                            # N = 32 spectra
    # Positive spectra keep the angle well inside acos' domain interior.
    inp = jax.random.uniform(k1, (batch, pixels, num_bands),
                             minval=0.1, maxval=1.0, dtype=jnp.float32)
    target = jax.random.uniform(k2, (batch, pixels, num_bands),
                                minval=0.1, maxval=1.0, dtype=jnp.float32)
    angle = jax.block_until_ready(sad(inp, target, num_bands))
    ref = _sad_reference(inp, target, num_bands)
    assert angle.shape == (batch * pixels, 1, 1)
    assert jnp.allclose(angle, ref, atol=1e-3, rtol=1e-3), "case1 mismatch"

    # Case 2: row count not divisible by the pack factor (exercises padding).
    n2 = 30
    inp2 = jax.random.uniform(k3, (n2, num_bands),
                              minval=0.1, maxval=1.0, dtype=jnp.float32)
    target2 = jax.random.uniform(k4, (n2, num_bands),
                                 minval=0.1, maxval=1.0, dtype=jnp.float32)
    angle2 = jax.block_until_ready(sad(inp2, target2, num_bands))
    ref2 = _sad_reference(inp2, target2, num_bands)
    assert angle2.shape == (n2, 1, 1)
    assert jnp.allclose(angle2, ref2, atol=1e-3, rtol=1e-3), "case2 mismatch"

    print("KERNEL_OK")
</pallas_src>

<mosaic_0001>
module attributes {stable_mosaic.version = 11 : i64} {
  func.func @_sad_kernel(%arg0: i32, %arg1: memref<8x128xf32, #tpu.memory_space<vmem>>, %arg2: memref<8x128xf32, #tpu.memory_space<vmem>>, %arg3: memref<128x4xf32, #tpu.memory_space<vmem>>, %arg4: memref<8x4xf32, #tpu.memory_space<vmem>>) attributes {dimension_semantics = [#tpu.dimension_semantics<parallel>], iteration_bounds = array<i64: 1>, scalar_prefetch = 0 : i64, scratch_operands = 0 : i64, tpu.core_type = #tpu.core_type<tc>, window_params = [{transform_indices = @transform_0, window_bounds = array<i64: 8, 128>}, {transform_indices = @transform_1, window_bounds = array<i64: 8, 128>}, {pipeline_mode = #tpu.pipeline_mode<synchronous>, transform_indices = @transform_2, window_bounds = array<i64: 128, 4>}, {transform_indices = @transform_3, window_bounds = array<i64: 8, 4>}]} {
    %c0 = arith.constant 0 : index
    %c0_0 = arith.constant 0 : index
    %0 = vector.load %arg1[%c0, %c0_0] : memref<8x128xf32, #tpu.memory_space<vmem>>, vector<8x128xf32>
    %c0_1 = arith.constant 0 : index
    %c0_2 = arith.constant 0 : index
    %1 = vector.load %arg2[%c0_1, %c0_2] : memref<8x128xf32, #tpu.memory_space<vmem>>, vector<8x128xf32>
    %c0_3 = arith.constant 0 : index
    %c0_4 = arith.constant 0 : index
    %2 = vector.load %arg3[%c0_3, %c0_4] : memref<128x4xf32, #tpu.memory_space<vmem>>, vector<128x4xf32>
    %3 = arith.mulf %0, %0 : vector<8x128xf32>
    %cst = arith.constant dense<0.000000e+00> : vector<8x4xf32>
    %4 = tpu.matmul %3, %2, %cst {dimension_numbers = #tpu.dot_dimension_numbers<[1], [0], [0], [1], [0, 0, 1, 1], [], []>} : vector<8x128xf32>, vector<128x4xf32>, vector<8x4xf32> -> vector<8x4xf32>
    %5 = arith.mulf %1, %1 : vector<8x128xf32>
    %cst_5 = arith.constant dense<0.000000e+00> : vector<8x4xf32>
    %6 = tpu.matmul %5, %2, %cst_5 {dimension_numbers = #tpu.dot_dimension_numbers<[1], [0], [0], [1], [0, 0, 1, 1], [], []>} : vector<8x128xf32>, vector<128x4xf32>, vector<8x4xf32> -> vector<8x4xf32>
    %7 = arith.mulf %0, %1 : vector<8x128xf32>
    %cst_6 = arith.constant dense<0.000000e+00> : vector<8x4xf32>
    %8 = tpu.matmul %7, %2, %cst_6 {dimension_numbers = #tpu.dot_dimension_numbers<[1], [0], [0], [1], [0, 0, 1, 1], [], []>} : vector<8x128xf32>, vector<128x4xf32>, vector<8x4xf32> -> vector<8x4xf32>
    %9 = arith.mulf %4, %6 : vector<8x4xf32>
    %10 = math.rsqrt %9 : vector<8x4xf32>
    %11 = arith.mulf %8, %10 : vector<8x4xf32>
    %cst_7 = arith.constant -1.000000e+00 : f32
    %cst_8 = arith.constant 1.000000e+00 : f32
    %12 = vector.broadcast %cst_7 : f32 to vector<8x4xf32>
    %13 = arith.maximumf %12, %11 : vector<8x4xf32>
    %14 = vector.broadcast %cst_8 : f32 to vector<8x4xf32>
    %15 = arith.minimumf %14, %13 : vector<8x4xf32>
    %16 = math.absf %15 : vector<8x4xf32>
    %cst_9 = arith.constant -0.0012624911 : f32
    %17 = vector.broadcast %cst_9 : f32 to vector<8x4xf32>
    %18 = arith.mulf %17, %16 : vector<8x4xf32>
    %cst_10 = arith.constant 6.670090e-03 : f32
    %19 = vector.broadcast %cst_10 : f32 to vector<8x4xf32>
    %20 = arith.addf %18, %19 : vector<8x4xf32>
    %21 = arith.mulf %20, %16 : vector<8x4xf32>
    %cst_11 = arith.constant -0.0170881264 : f32
    %22 = vector.broadcast %cst_11 : f32 to vector<8x4xf32>
    %23 = arith.addf %21, %22 : vector<8x4xf32>
    %24 = arith.mulf %23, %16 : vector<8x4xf32>
    %cst_12 = arith.constant 0.0308918804 : f32
    %25 = vector.broadcast %cst_12 : f32 to vector<8x4xf32>
    %26 = arith.addf %24, %25 : vector<8x4xf32>
    %27 = arith.mulf %26, %16 : vector<8x4xf32>
    %cst_13 = arith.constant -0.0501743034 : f32
    %28 = vector.broadcast %cst_13 : f32 to vector<8x4xf32>
    %29 = arith.addf %27, %28 : vector<8x4xf32>
    %30 = arith.mulf %29, %16 : vector<8x4xf32>
    %cst_14 = arith.constant 0.0889789909 : f32
    %31 = vector.broadcast %cst_14 : f32 to vector<8x4xf32>
    %32 = arith.addf %30, %31 : vector<8x4xf32>
    %33 = arith.mulf %32, %16 : vector<8x4xf32>
    %cst_15 = arith.constant -0.214598805 : f32
    %34 = vector.broadcast %cst_15 : f32 to vector<8x4xf32>
    %35 = arith.addf %33, %34 : vector<8x4xf32>
    %36 = arith.mulf %35, %16 : vector<8x4xf32>
    %cst_16 = arith.constant 1.57079625 : f32
    %37 = vector.broadcast %cst_16 : f32 to vector<8x4xf32>
    %38 = arith.addf %36, %37 : vector<8x4xf32>
    %cst_17 = arith.constant 1.000000e+00 : f32
    %39 = vector.broadcast %cst_17 : f32 to vector<8x4xf32>
    %40 = arith.subf %39, %16 : vector<8x4xf32>
    %cst_18 = arith.constant 0.000000e+00 : f32
    %41 = vector.broadcast %cst_18 : f32 to vector<8x4xf32>
    %42 = arith.maximumf %40, %41 : vector<8x4xf32>
    %43 = math.sqrt %42 : vector<8x4xf32>
    %44 = arith.mulf %43, %38 : vector<8x4xf32>
    %cst_19 = arith.constant 0.000000e+00 : f32
    %45 = vector.broadcast %cst_19 : f32 to vector<8x4xf32>
    %46 = arith.cmpf oge, %15, %45 : vector<8x4xf32>
    %cst_20 = arith.constant 3.14159274 : f32
    %47 = vector.broadcast %cst_20 : f32 to vector<8x4xf32>
    %48 = arith.subf %47, %44 : vector<8x4xf32>
    %49 = arith.select %46, %44, %48 : vector<8x4xi1>, vector<8x4xf32>
    %c0_21 = arith.constant 0 : index
    %c0_22 = arith.constant 0 : index
    %50 = vector.load %arg4[%c0_21, %c0_22] : memref<8x4xf32, #tpu.memory_space<vmem>>, vector<8x4xf32>
    tpu.vector_store %arg4[%c0_21, %c0_22], %49 {strides = array<i32>} : memref<8x4xf32, #tpu.memory_space<vmem>>, vector<8x4xf32>,
    return
  }
  func.func @transform_0(%arg0: i32) -> (i32, i32) {
    %c0_i32 = arith.constant 0 : i32
    %c0_i32_0 = arith.constant 0 : i32
    return %arg0, %c0_i32 : i32, i32
  }
  func.func @transform_1(%arg0: i32) -> (i32, i32) {
    %c0_i32 = arith.constant 0 : i32
    %c0_i32_0 = arith.constant 0 : i32
    return %arg0, %c0_i32 : i32, i32
  }
  func.func @transform_2(%arg0: i32) -> (i32, i32) {
    %c0_i32 = arith.constant 0 : i32
    %c0_i32_0 = arith.constant 0 : i32
    %c0_i32_1 = arith.constant 0 : i32
    return %c0_i32, %c0_i32_0 : i32, i32
  }
  func.func @transform_3(%arg0: i32) -> (i32, i32) {
    %c0_i32 = arith.constant 0 : i32
    %c0_i32_0 = arith.constant 0 : i32
    return %arg0, %c0_i32 : i32, i32
  }
}

</mosaic_0001>

<llo_original>
// kernel: tpu_custom_call.1
$region0: #{tpu_custom_call.1}
  #allocation0 [shape = 'u32[]', space=smem, size = 0x4, offset = 0x4, fixed_abs, tag = 'smem constant byte address 0x4 - core index']
  #allocation1 [shape = 'u32[144,128]{1,0:T(1,128)}', space=vmem, size = 0x12000, scoped, tag = 'internal scratch']
  %s0 = inlined_call_operand.vmem [shape: f32[8,128], index: 0, kind: input, shape index: {}]
  %s1 = inlined_call_operand.vmem [shape: f32[8,128], index: 1, kind: input, shape index: {}]
  %s2 = inlined_call_operand.vmem [shape: f32[128,4], index: 2, kind: input, shape index: {}]
  %s3 = inlined_call_operand.vmem [shape: f32[8,4], index: 3, kind: output, shape index: {}]
  %s4 = sld [smem:[#allocation0]]
  $region22: #{tpu_custom_call.1} parent=0
    _
  %s6 = ssub.s32 1, %s4
  %s7 = scalar_select 0, %s6, %s4
  // Predicated region
  $region2: #{tpu_custom_call.1} parent=0 // pred_check
    _
  $region3: #{tpu_custom_call.1} parent=0 // pred_check_branch
    %9 = sbr.rel (0) target = $region5
  $region4: #{tpu_custom_call.1} parent=0 // pred_region
    _
  $region5: #{tpu_custom_call.1} parent=0 // pred_fallthru
    _
  // Predicated region
  $region6: #{tpu_custom_call.1} parent=0 // pred_check
    _
  $region7: #{tpu_custom_call.1} parent=0 // pred_check_branch
    %11 = sbr.rel (0) target = $region9
  $region8: #{tpu_custom_call.1} parent=0 // pred_region
    _
  $region9: #{tpu_custom_call.1} parent=0 // pred_fallthru
    _
  // Predicated region
  $region10: #{tpu_custom_call.1} parent=0 // pred_check
    _
  $region11: #{tpu_custom_call.1} parent=0 // pred_check_branch
    %13 = sbr.rel (0) target = $region13
  $region12: #{tpu_custom_call.1} parent=0 // pred_region
    _
  $region13: #{tpu_custom_call.1} parent=0 // pred_fallthru
    _
  %v14 = vld [vmem:[%s0] sm:$0xff]
  %v15 = vld [vmem:[%s1] sm:$0xff]
  %v16 = vld [vmem:[%s2] sm:$0xff]
  %v17 = vld [vmem:[%s2 + $0x8] sm:$0xff]
  %v18 = vld [vmem:[%s2 + $0x10] sm:$0xff]
  %v19 = vld [vmem:[%s2 + $0x18] sm:$0xff]
  %v20 = vld [vmem:[%s2 + $0x20] sm:$0xff]
  %v21 = vld [vmem:[%s2 + $0x28] sm:$0xff]
  %v22 = vld [vmem:[%s2 + $0x30] sm:$0xff]
  %v23 = vld [vmem:[%s2 + $0x38] sm:$0xff]
  %v24 = vld [vmem:[%s2 + $0x40] sm:$0xff]
  %v25 = vld [vmem:[%s2 + $0x48] sm:$0xff]
  %v26 = vld [vmem:[%s2 + $0x50] sm:$0xff]
  %v27 = vld [vmem:[%s2 + $0x58] sm:$0xff]
  %v28 = vld [vmem:[%s2 + $0x60] sm:$0xff]
  %v29 = vld [vmem:[%s2 + $0x68] sm:$0xff]
  %v30 = vld [vmem:[%s2 + $0x70] sm:$0xff]
  %v31 = vld [vmem:[%s2 + $0x78] sm:$0xff]
  %v32 = vmul.f32 %v14, %v14
  %33 = vmatprep.subr.mxu0 0.0
  %34 = vmatpush1.msra.mxu0 %v31
  %35 = vmatprep.subr.mxu0 0.0
  %36 = vmatpush1.msra.mxu0 %v30
  %37 = vmatprep.subr.mxu0 0.0
  %38 = vmatpush1.msra.mxu0 %v29
  %39 = vmatprep.subr.mxu0 0.0
  %40 = vmatpush1.msra.mxu0 %v28
  %41 = vmatprep.subr.mxu0 0.0
  %42 = vmatpush1.msra.mxu0 %v27
  %43 = vmatprep.subr.mxu0 0.0
  %44 = vmatpush1.msra.mxu0 %v26
  %45 = vmatprep.subr.mxu0 0.0
  %46 = vmatpush1.msra.mxu0 %v25
  %47 = vmatprep.subr.mxu0 0.0
  %48 = vmatpush1.msra.mxu0 %v24
  %49 = vmatprep.subr.mxu0 0.0
  %50 = vmatpush1.msra.mxu0 %v23
  %51 = vmatprep.subr.mxu0 0.0
  %52 = vmatpush1.msra.mxu0 %v22
  %53 = vmatprep.subr.mxu0 0.0
  %54 = vmatpush1.msra.mxu0 %v21
  %55 = vmatprep.subr.mxu0 0.0
  %56 = vmatpush1.msra.mxu0 %v20
  %57 = vmatprep.subr.mxu0 0.0
  %58 = vmatpush1.msra.mxu0 %v19
  %59 = vmatprep.subr.mxu0 0.0
  %60 = vmatpush1.msra.mxu0 %v18
  %61 = vmatprep.subr.mxu0 0.0
  %62 = vmatpush1.msra.mxu0 %v17
  %63 = vmatprep.subr.mxu0 0.0
  %64 = vmatpush1.msra.mxu0 %v16
  %65 = vmatprep.subr.mxu0 0.0
  %66 = vmatpush2.msra.mxu0 0.0
  %67 = vmatprep.subr.mxu0 0.0
  %68 = vmatpush2.msra.mxu0 0.0
  %69 = vmatprep.subr.mxu0 0.0
  %70 = vmatpush2.msra.mxu0 0.0
  %71 = vmatprep.subr.mxu0 0.0
  %72 = vmatpush2.msra.mxu0 0.0
  %73 = vmatprep.subr.mxu0 0.0
  %74 = vmatpush2.msra.mxu0 0.0
  %75 = vmatprep.subr.mxu0 0.0
  %76 = vmatpush2.msra.mxu0 0.0
  %77 = vmatprep.subr.mxu0 0.0
  %78 = vmatpush2.msra.mxu0 0.0
  %79 = vmatprep.subr.mxu0 0.0
  %80 = vmatpush2.msra.mxu0 0.0
  %81 = vmatprep.subr.mxu0 0.0
  %82 = vmatpush2.msra.mxu0 0.0
  %83 = vmatprep.subr.mxu0 0.0
  %84 = vmatpush2.msra.mxu0 0.0
  %85 = vmatprep.subr.mxu0 0.0
  %86 = vmatpush2.msra.mxu0 0.0
  %87 = vmatprep.subr.mxu0 0.0
  %88 = vmatpush2.msra.mxu0 0.0
  %89 = vmatprep.subr.mxu0 0.0
  %90 = vmatpush2.msra.mxu0 0.0
  %91 = vmatprep.subr.mxu0 0.0
  %92 = vmatpush2.msra.mxu0 0.0
  %93 = vmatprep.subr.mxu0 0.0
  %94 = vmatpush2.msra.mxu0 0.0
  %95 = vmatprep.subr.mxu0 0.0
  %96 = vmatpush2.msra.mxu0 0.0
  %97 = vmatprep.mubr.f32.mxu0 0.0
  %98 = vmatmul.mubr.f32.gmra.mxu0 %v32
  %v99 = vpop.f32.mrf.mxu0
  %v100 = vadd.f32 0.0, %v99
  %v101 = vpop.f32.mrf.mxu0
  %102 = vdwg.mxu0
  %v103 = vmul.f32 %v15, %v15
  %104 = vmatprep.subr.mxu0 0.0
  %105 = vmatpush1.msra.mxu0 %v31
  %106 = vmatprep.subr.mxu0 0.0
  %107 = vmatpush1.msra.mxu0 %v30
  %108 = vmatprep.subr.mxu0 0.0
  %109 = vmatpush1.msra.mxu0 %v29
  %110 = vmatprep.subr.mxu0 0.0
  %111 = vmatpush1.msra.mxu0 %v28
  %112 = vmatprep.subr.mxu0 0.0
  %113 = vmatpush1.msra.mxu0 %v27
  %114 = vmatprep.subr.mxu0 0.0
  %115 = vmatpush1.msra.mxu0 %v26
  %116 = vmatprep.subr.mxu0 0.0
  %117 = vmatpush1.msra.mxu0 %v25
  %118 = vmatprep.subr.mxu0 0.0
  %119 = vmatpush1.msra.mxu0 %v24
  %120 = vmatprep.subr.mxu0 0.0
  %121 = vmatpush1.msra.mxu0 %v23
  %122 = vmatprep.subr.mxu0 0.0
  %123 = vmatpush1.msra.mxu0 %v22
  %124 = vmatprep.subr.mxu0 0.0
  %125 = vmatpush1.msra.mxu0 %v21
  %126 = vmatprep.subr.mxu0 0.0
  %127 = vmatpush1.msra.mxu0 %v20
  %128 = vmatprep.subr.mxu0 0.0
  %129 = vmatpush1.msra.mxu0 %v19
  %130 = vmatprep.subr.mxu0 0.0
  %131 = vmatpush1.msra.mxu0 %v18
  %132 = vmatprep.subr.mxu0 0.0
  %133 = vmatpush1.msra.mxu0 %v17
  %134 = vmatprep.subr.mxu0 0.0
  %135 = vmatpush1.msra.mxu0 %v16
  %136 = vmatprep.subr.mxu0 0.0
  %137 = vmatpush2.msra.mxu0 0.0
  %138 = vmatprep.subr.mxu0 0.0
  %139 = vmatpush2.msra.mxu0 0.0
  %140 = vmatprep.subr.mxu0 0.0
  %141 = vmatpush2.msra.mxu0 0.0
  %142 = vmatprep.subr.mxu0 0.0
  %143 = vmatpush2.msra.mxu0 0.0
  %144 = vmatprep.subr.mxu0 0.0
  %145 = vmatpush2.msra.mxu0 0.0
  %146 = vmatprep.subr.mxu0 0.0
  %147 = vmatpush2.msra.mxu0 0.0
  %148 = vmatprep.subr.mxu0 0.0
  %149 = vmatpush2.msra.mxu0 0.0
  %150 = vmatprep.subr.mxu0 0.0
  %151 = vmatpush2.msra.mxu0 0.0
  %152 = vmatprep.subr.mxu0 0.0
  %153 = vmatpush2.msra.mxu0 0.0
  %154 = vmatprep.subr.mxu0 0.0
  %155 = vmatpush2.msra.mxu0 0.0
  %156 = vmatprep.subr.mxu0 0.0
  %157 = vmatpush2.msra.mxu0 0.0
  %158 = vmatprep.subr.mxu0 0.0
  %159 = vmatpush2.msra.mxu0 0.0
  %160 = vmatprep.subr.mxu0 0.0
  %161 = vmatpush2.msra.mxu0 0.0
  %162 = vmatprep.subr.mxu0 0.0
  %163 = vmatpush2.msra.mxu0 0.0
  %164 = vmatprep.subr.mxu0 0.0
  %165 = vmatpush2.msra.mxu0 0.0
  %166 = vmatprep.subr.mxu0 0.0
  %167 = vmatpush2.msra.mxu0 0.0
  %168 = vmatprep.mubr.f32.mxu0 0.0
  %169 = vmatmul.mubr.f32.gmra.mxu0 %v103
  %v170 = vpop.f32.mrf.mxu0
  %v171 = vadd.f32 0.0, %v170
  %v172 = vpop.f32.mrf.mxu0
  %173 = vdwg.mxu0
  %v174 = vmul.f32 %v14, %v15
  %175 = vmatprep.subr.mxu0 0.0
  %176 = vmatpush1.msra.mxu0 %v31
  %177 = vmatprep.subr.mxu0 0.0
  %178 = vmatpush1.msra.mxu0 %v30
  %179 = vmatprep.subr.mxu0 0.0
  %180 = vmatpush1.msra.mxu0 %v29
  %181 = vmatprep.subr.mxu0 0.0
  %182 = vmatpush1.msra.mxu0 %v28
  %183 = vmatprep.subr.mxu0 0.0
  %184 = vmatpush1.msra.mxu0 %v27
  %185 = vmatprep.subr.mxu0 0.0
  %186 = vmatpush1.msra.mxu0 %v26
  %187 = vmatprep.subr.mxu0 0.0
  %188 = vmatpush1.msra.mxu0 %v25
  %189 = vmatprep.subr.mxu0 0.0
  %190 = vmatpush1.msra.mxu0 %v24
  %191 = vmatprep.subr.mxu0 0.0
  %192 = vmatpush1.msra.mxu0 %v23
  %193 = vmatprep.subr.mxu0 0.0
  %194 = vmatpush1.msra.mxu0 %v22
  %195 = vmatprep.subr.mxu0 0.0
  %196 = vmatpush1.msra.mxu0 %v21
  %197 = vmatprep.subr.mxu0 0.0
  %198 = vmatpush1.msra.mxu0 %v20
  %199 = vmatprep.subr.mxu0 0.0
  %200 = vmatpush1.msra.mxu0 %v19
  %201 = vmatprep.subr.mxu0 0.0
  %202 = vmatpush1.msra.mxu0 %v18
  %203 = vmatprep.subr.mxu0 0.0
  %204 = vmatpush1.msra.mxu0 %v17
  %205 = vmatprep.subr.mxu0 0.0
  %206 = vmatpush1.msra.mxu0 %v16
  %207 = vmatprep.subr.mxu0 0.0
  %208 = vmatpush2.msra.mxu0 0.0
  %209 = vmatprep.subr.mxu0 0.0
  %210 = vmatpush2.msra.mxu0 0.0
  %211 = vmatprep.subr.mxu0 0.0
  %212 = vmatpush2.msra.mxu0 0.0
  %213 = vmatprep.subr.mxu0 0.0
  %214 = vmatpush2.msra.mxu0 0.0
  %215 = vmatprep.subr.mxu0 0.0
  %216 = vmatpush2.msra.mxu0 0.0
  %217 = vmatprep.subr.mxu0 0.0
  %218 = vmatpush2.msra.mxu0 0.0
  %219 = vmatprep.subr.mxu0 0.0
  %220 = vmatpush2.msra.mxu0 0.0
  %221 = vmatprep.subr.mxu0 0.0
  %222 = vmatpush2.msra.mxu0 0.0
  %223 = vmatprep.subr.mxu0 0.0
  %224 = vmatpush2.msra.mxu0 0.0
  %225 = vmatprep.subr.mxu0 0.0
  %226 = vmatpush2.msra.mxu0 0.0
  %227 = vmatprep.subr.mxu0 0.0
  %228 = vmatpush2.msra.mxu0 0.0
  %229 = vmatprep.subr.mxu0 0.0
  %230 = vmatpush2.msra.mxu0 0.0
  %231 = vmatprep.subr.mxu0 0.0
  %232 = vmatpush2.msra.mxu0 0.0
  %233 = vmatprep.subr.mxu0 0.0
  %234 = vmatpush2.msra.mxu0 0.0
  %235 = vmatprep.subr.mxu0 0.0
  %236 = vmatpush2.msra.mxu0 0.0
  %237 = vmatprep.subr.mxu0 0.0
  %238 = vmatpush2.msra.mxu0 0.0
  %239 = vmatprep.mubr.f32.mxu0 0.0
  %240 = vmatmul.mubr.f32.gmra.mxu0 %v174
  %v241 = vpop.f32.mrf.mxu0
  %v242 = vadd.f32 0.0, %v241
  %v243 = vpop.f32.mrf.mxu0
  %244 = vdwg.mxu0
  %v245 = vmul.f32 %v100, %v171
  %v246 = vrsqrt.pop %v245
  %v247 = vmul.f32 %v242, %v246
  %v248 = vmax.f32 %v247, -1.0
  %v249 = vmin.f32 %v248, 1.0
  %v250 = vand.u32 2147483647, %v249
  %v251 = vmul.f32 %v250, -0.0012624911
  %v252 = vadd.f32 %v251, 0.00667009
  %v253 = vmul.f32 %v252, %v250
  %v254 = vadd.f32 %v253, -0.017088126
  %v255 = vmul.f32 %v254, %v250
  %v256 = vadd.f32 %v255, 0.03089188
  %v257 = vmul.f32 %v256, %v250
  %v258 = vadd.f32 %v257, -0.050174303
  %v259 = vmul.f32 %v258, %v250
  %v260 = vadd.f32 %v259, 0.08897899
  %v261 = vmul.f32 %v260, %v250
  %v262 = vadd.f32 %v261, -0.2145988
  %v263 = vmul.f32 %v262, %v250
  %v264 = vadd.f32 %v263, 1.5707963
  %v265 = vsub.f32 1.0, %v250
  %v266 = vmax.f32 %v265, 0.0
  %v267 = vrsqrt.pop %v266
  %v268 = vmul.f32 %v266, %v267
  %vm269 = vcmp.eq.f32.partialorder %v266, inf
  %v270 = vsel %vm269, %v266, %v268
  %vm271 = vcmp.eq.f32.partialorder %v266, 0.0
  %v272 = vand.u32 %v266, 2147483648
  %v273 = vsel %vm271, %v272, %v270
  %v274 = vmul.f32 %v273, %v264
  %vm275 = vcmp.ge.f32.partialorder %v249, 0.0
  %v276 = vsub.f32 3.1415927, %v274
  %v277 = vsel %vm275, %v274, %v276
  %vm278 = vcmask 31744
  %279 = vst.msk [vmem:[%s3] sm:$0xff] %vm278, %v277
  // Predicated region
  $region14: #{tpu_custom_call.1} parent=0 // pred_check
    _
  $region15: #{tpu_custom_call.1} parent=0 // pred_check_branch
    %281 = sbr.rel (0) target = $region17
  $region16: #{tpu_custom_call.1} parent=0 // pred_region
    _
  $region17: #{tpu_custom_call.1} parent=0 // pred_fallthru
    _
  // Predicated region
  $region18: #{tpu_custom_call.1} parent=0 // pred_check
    _
  $region19: #{tpu_custom_call.1} parent=0 // pred_check_branch
    %283 = sbr.rel (0) target = $region21
  $region20: #{tpu_custom_call.1} parent=0 // pred_region
    _
  $region21: #{tpu_custom_call.1} parent=0 // pred_fallthru
    _

</llo_original>
